<compile_context>
chip_gen: v7x
topology: tpu7x:2x2x1
jax: 0.10.0
libtpu: 0.0.40
codegen_flags: <defaults>
</compile_context>

<pallas_src>
import jax
import jax.numpy as jnp
from jax.experimental import pallas as pl
from jax.experimental.pallas import tpu as pltpu


def _copy_kernel(x_ref, o_ref):
    # Pure copy of the current (tb, C) tile: one vld / one vst, all cost is DMA.
    o_ref[...] = x_ref[...]


def _vmem_capacity_bytes() -> int:
    try:
        return int(pltpu.get_tpu_info().vmem_capacity_bytes)
    except Exception:
        return 128 << 20  # v5e/v6e physical VMEM; v7x reports 64 MiB itself.


def _round_down_mult(x: int, m: int) -> int:
    return (x // m) * m


def squeeze_channels(x: jax.Array) -> jax.Array:
    """Standalone equivalent of torch .squeeze(2): zero-cost metadata reshape."""
    B, C, one = x.shape
    assert one == 1, f"third dimension must be 1 to squeeze, got {one}"
    return x.reshape(B, C)


def squeeze_channels_pallas(x: jax.Array, *, tile_budget_bytes: int | None = None) -> jax.Array:
    """Pallas fusion-site variant of squeeze(2) for a (B, C, 1) tensor."""
    B, C, one = x.shape
    assert one == 1, f"third dimension must be 1 to squeeze, got {one}"

    # Drop the singleton axis in the wrapper so the kernel sees a lane-dense
    # (B, C) layout (C on the 128-wide lane axis) instead of a padded size-1
    # minor dim.
    x2 = x.reshape(B, C)

    itemsize = jnp.dtype(x.dtype).itemsize
    vmem_cap = _vmem_capacity_bytes()
    if tile_budget_bytes is None:
        # 2 input + 2 output double-buffered tiles are live at once => 4x tile.
        # Cap the tile at 8 MiB or vmem_cap/8, whichever is smaller (leaves
        # headroom on v7x's 64 MiB VMEM, uses large tiles on v5e/v6e).
        tile_budget_bytes = min(8 << 20, vmem_cap // 8)

    row_bytes = C * itemsize
    total_bytes = B * row_bytes

    if total_bytes <= tile_budget_bytes or B <= 8:
        # Whole array as a single block: exempt from the (8,128) rule, nothing
        # to pipeline anyway at this size.
        tb = B
        grid = (1,)
        dim_sem = ("arbitrary",)
    else:
        # cdiv grid over the batch axis with a large fixed tile. tb is a
        # multiple of 8 (second-to-last dim rule); last dim is the full C so a
        # ragged C is exempt from the 128 rule. Pallas masks the ragged last
        # batch block.
        tb = max(8, _round_down_mult(tile_budget_bytes // row_bytes, 8))
        tb = min(tb, B)
        grid = (pl.cdiv(B, tb),)
        dim_sem = ("parallel",)

    tile_bytes = tb * row_bytes
    vmem_limit = int(min(vmem_cap, max(32 << 20, 4.5 * tile_bytes + (1 << 20))))

    return pl.pallas_call(
        _copy_kernel,
        out_shape=jax.ShapeDtypeStruct((B, C), x.dtype),
        grid=grid,
        in_specs=[pl.BlockSpec((tb, C), lambda i: (i, 0))],
        out_specs=pl.BlockSpec((tb, C), lambda i: (i, 0)),
        # No second HBM buffer when the caller donates the input (XLA inserts
        # a copy otherwise, so this is always safe).
        input_output_aliases={0: 0},
        compiler_params=pltpu.CompilerParams(
            dimension_semantics=dim_sem,
            vmem_limit_bytes=vmem_limit,
        ),
    )(x2)


if __name__ == "__main__":
    key = jax.random.PRNGKey(0)

    # Small shape consistent with the module: (batch=2, channels=32, 1).
    x_small = jax.random.normal(key, (2, 32, 1), dtype=jnp.float32)
    ref_small = jnp.squeeze(x_small, axis=2)

    # Preferred standalone path: pure metadata reshape, no kernel launch.
    out_meta = jax.block_until_ready(squeeze_channels(x_small))
    assert out_meta.shape == (2, 32) and out_meta.dtype == x_small.dtype
    assert jnp.array_equal(out_meta, ref_small), "mismatch (metadata path)"

    # Pallas fusion-site kernel: single full-array block path.
    out_small = jax.block_until_ready(squeeze_channels_pallas(x_small))
    assert out_small.shape == (2, 32) and out_small.dtype == x_small.dtype
    assert jnp.array_equal(out_small, ref_small), "mismatch (small shape)"

    # Exercise the tiled cdiv-grid path (ragged last batch block, ragged C) by
    # forcing a tiny tile budget; still a small, fast test shape.
    x_big = jax.random.normal(jax.random.PRNGKey(1), (40, 96, 1), dtype=jnp.float32)
    ref_big = jnp.squeeze(x_big, axis=2)
    out_big = jax.block_until_ready(
        squeeze_channels_pallas(x_big, tile_budget_bytes=16 * 96 * 4)
    )
    assert out_big.shape == (40, 96) and out_big.dtype == x_big.dtype
    assert jnp.array_equal(out_big, ref_big), "mismatch (tiled shape)"

    print("KERNEL_OK")
</pallas_src>

<mosaic_0001>
module attributes {stable_mosaic.version = 11 : i64} {
  func.func @_copy_kernel(%arg0: i32, %arg1: memref<2x32xf32, #tpu.memory_space<vmem>>, %arg2: memref<2x32xf32, #tpu.memory_space<vmem>>) attributes {dimension_semantics = [#tpu.dimension_semantics<arbitrary>], iteration_bounds = array<i64: 1>, scalar_prefetch = 0 : i64, scratch_operands = 0 : i64, tpu.core_type = #tpu.core_type<tc>, window_params = [{transform_indices = @transform_0, window_bounds = array<i64: 2, 32>}, {transform_indices = @transform_1, window_bounds = array<i64: 2, 32>}]} {
    %c0 = arith.constant 0 : index
    %c0_0 = arith.constant 0 : index
    %0 = vector.load %arg1[%c0, %c0_0] : memref<2x32xf32, #tpu.memory_space<vmem>>, vector<2x32xf32>
    %c0_1 = arith.constant 0 : index
    %c0_2 = arith.constant 0 : index
    %1 = vector.load %arg2[%c0_1, %c0_2] : memref<2x32xf32, #tpu.memory_space<vmem>>, vector<2x32xf32>
    tpu.vector_store %arg2[%c0_1, %c0_2], %0 {strides = array<i32>} : memref<2x32xf32, #tpu.memory_space<vmem>>, vector<2x32xf32>,
    return
  }
  func.func @transform_0(%arg0: i32) -> (i32, i32) {
    %c0_i32 = arith.constant 0 : i32
    %c0_i32_0 = arith.constant 0 : i32
    return %arg0, %c0_i32 : i32, i32
  }
  func.func @transform_1(%arg0: i32) -> (i32, i32) {
    %c0_i32 = arith.constant 0 : i32
    %c0_i32_0 = arith.constant 0 : i32
    return %arg0, %c0_i32 : i32, i32
  }
}

</mosaic_0001>

<llo_original>
// kernel: tpu_custom_call.1
$region0: #{tpu_custom_call.1}
  #allocation0 [shape = 'u32[]', space=smem, size = 0x4, offset = 0x4, fixed_abs, tag = 'smem constant byte address 0x4 - core index']
  #allocation1 [shape = 'u32[144,128]{1,0:T(1,128)}', space=vmem, size = 0x12000, scoped, tag = 'internal scratch']
  %s0 = inlined_call_operand.hbm [shape: f32[2,32], index: 0, kind: input, shape index: {}, may-alias: {0,1}]
  %s1 = inlined_call_operand.hbm [shape: f32[2,32], index: 1, kind: output, shape index: {}, may-alias: {0,1}]
  %s2 = sld [smem:[#allocation0]]
  $region18: #{tpu_custom_call.1} parent=0
    _
  %s4 = ssub.s32 1, %s2
  %s5 = scalar_select 0, %s4, %s2
  $region1: #{tpu_custom_call.1} parent=0
    #allocation2 [shape = 'u8[1024]{0}', space=vmem, size = 0x400, scoped, tag = 'input window, operand 0, single buffered']
    #allocation3 [shape = 's32[1]{0}', space=sflag, size = 0x4, scoped, tag = 'scoped memory for tpu_custom_call.1']
    #allocation4 [shape = 's32[1]{0}', space=sflag, size = 0x4, scoped, tag = 'scoped memory for tpu_custom_call.1']
    #allocation5 [shape = 'u8[1024]{0}', space=vmem, size = 0x400, scoped, tag = 'output window, operand 0, single buffered']
    %6 = vsyncpa [#allocation3], 0
    %7 = vsyncpa [#allocation4], 0
    // Predicated region
    $region2: #{tpu_custom_call.1} parent=1 // pred_check
      _
    $region3: #{tpu_custom_call.1} parent=1 // pred_check_branch
      %9 = sbr.rel (0) target = $region5
    $region4: #{tpu_custom_call.1} parent=1 // pred_region
      %s11 = ssub.s32 32, 32
      %12 = vsyncadd [#allocation3], %s11
      %s14 = sshll.u32 [#allocation2], 4
      %s15 = int_to_ptr.vmem [resolvable:$true] %s14
      %17 = dma.hbm_to_vmem [thread:$0]  %s0, 32, %s15, [#allocation3]
    $region5: #{tpu_custom_call.1} parent=1 // pred_fallthru
      _
    // Predicated region
    $region6: #{tpu_custom_call.1} parent=1 // pred_check
      _
    $region7: #{tpu_custom_call.1} parent=1 // pred_check_branch
      %19 = sbr.rel (0) target = $region9
    $region8: #{tpu_custom_call.1} parent=1 // pred_region
      %20 = dma.done [#allocation3], 32
    $region9: #{tpu_custom_call.1} parent=1 // pred_fallthru
      _
    %v21 = vld [vmem:[#allocation2] sm:$0x3]
    %vm22 = vcmask 254976
    %23 = vst.msk [vmem:[#allocation5] sm:$0x3] %vm22, %v21
    // Predicated region
    $region10: #{tpu_custom_call.1} parent=1 // pred_check
      _
    $region11: #{tpu_custom_call.1} parent=1 // pred_check_branch
      %25 = sbr.rel (0) target = $region13
    $region12: #{tpu_custom_call.1} parent=1 // pred_region
      %s27 = ssub.s32 32, 32
      %28 = vsyncadd [#allocation4], %s27
      %s30 = sshll.u32 [#allocation5], 4
      %s31 = int_to_ptr.vmem [resolvable:$true] %s30
      %33 = dma.vmem_to_hbm [thread:$0]  %s31, 32, %s1, [#allocation4]
    $region13: #{tpu_custom_call.1} parent=1 // pred_fallthru
      _
    // Predicated region
    $region14: #{tpu_custom_call.1} parent=1 // pred_check
      _
    $region15: #{tpu_custom_call.1} parent=1 // pred_check_branch
      %35 = sbr.rel (0) target = $region17
    $region16: #{tpu_custom_call.1} parent=1 // pred_region
      %36 = dma.done [#allocation4], 32
    $region17: #{tpu_custom_call.1} parent=1 // pred_fallthru
      _
    %37 = vsyncpa [#allocation3], 1
    %38 = vsyncpa [#allocation4], 1

</llo_original>
